<compile_context>
chip_gen: v5e
topology: v5e:2x2
jax: 0.10.0
libtpu: 0.0.40
codegen_flags: <defaults>
</compile_context>

<pallas_src>
import functools

import jax
import jax.numpy as jnp
from jax import lax
from jax.experimental import pallas as pl
from jax.experimental.pallas import tpu as pltpu

IN_FEATURES = 1024
OUT_FEATURES = 5
OUT_PAD = 128      # lane-dense padded output width
MAX_TM = 512       # row tile (safe under v5e's 16 MiB default scoped VMEM)


def _round_up(x, m):
    return (x + m - 1) // m * m


def _mix_u32(x):
    # murmur3-style 32-bit finalizer (wrapping uint32 arithmetic).
    x = x ^ (x >> jnp.uint32(16))
    x = x * jnp.uint32(0x7FEB352D)
    x = x ^ (x >> jnp.uint32(15))
    x = x * jnp.uint32(0x846CA68B)
    x = x ^ (x >> jnp.uint32(16))
    return x


def _elmo_head_kernel(seed_ref, x_ref, w_ref, b_ref, o_ref, *,
                      dropout_rate, tile_m):
    """seed_ref: SMEM int32[1] (scalar prefetch)
       x_ref:    VMEM [TM, 1024] f32
       w_ref:    VMEM [1024, 128] bf16 (pre-padded, transposed nn.Linear weight)
       b_ref:    VMEM [1, 128]   f32
       o_ref:    VMEM [TM, 128]  f32
    """
    x = x_ref[...].astype(jnp.float32)

    if dropout_rate > 0.0:  # static Python branch (training-mode dropout)
        # Counter-based PRNG: hash(global element index, seed) -> uint32 bits.
        row = lax.broadcasted_iota(jnp.uint32, x.shape, 0)
        col = lax.broadcasted_iota(jnp.uint32, x.shape, 1)
        grow = row + (pl.program_id(0) * tile_m).astype(jnp.uint32)
        ctr = grow * jnp.uint32(IN_FEATURES) + col
        seed = seed_ref[0].astype(jnp.uint32) * jnp.uint32(0x9E3779B9)
        bits = _mix_u32(ctr + seed)
        # P(bits >= p * 2^32) = 1 - p  ->  keep probability (1 - p).
        thresh = min(int(round(dropout_rate * (2 ** 32))), 2 ** 32 - 1)
        keep = bits >= jnp.uint32(thresh)
        scale = jnp.float32(1.0 / (1.0 - dropout_rate))
        x = jnp.where(keep, x * scale, jnp.float32(0.0))

    y = jnp.dot(x.astype(jnp.bfloat16), w_ref[...],
                preferred_element_type=jnp.float32)
    y = y + b_ref[...]
    o_ref[...] = y.astype(o_ref.dtype)


def pad_params(weight, bias):
    """Pad params once at load time (not per call): weight [1024,5] -> bf16
    [1024,128] lane-dense slab, bias [5] -> f32 [1,128]."""
    w_pad = jnp.zeros((IN_FEATURES, OUT_PAD), jnp.bfloat16)
    w_pad = w_pad.at[:, :OUT_FEATURES].set(weight.astype(jnp.bfloat16))
    b_pad = jnp.zeros((1, OUT_PAD), jnp.float32)
    b_pad = b_pad.at[0, :OUT_FEATURES].set(bias.astype(jnp.float32))
    return w_pad, b_pad


@functools.partial(jax.jit, static_argnames=("dropout_rate",))
def elmo_head(x, w_pad, b_pad, seed, *, dropout_rate=0.0):
    """x: [B, S, 1024] f32; w_pad/b_pad from pad_params(); seed: int32[1].
    Returns [B, S, OUT_FEATURES] f32."""
    B, S, F = x.shape
    assert F == IN_FEATURES
    M = B * S
    x2 = x.reshape(M, F)

    TM = min(MAX_TM, _round_up(M, 8))
    M_pad = _round_up(M, TM)
    if M_pad != M:
        x2 = jnp.pad(x2, ((0, M_pad - M), (0, 0)))
    grid = (M_pad // TM,)

    kernel = functools.partial(_elmo_head_kernel,
                               dropout_rate=float(dropout_rate), tile_m=TM)

    cost = pl.CostEstimate(
        flops=2 * M_pad * F * OUT_PAD,
        transcendentals=0,
        bytes_accessed=(4 * M_pad * F            # x in
                        + 2 * F * OUT_PAD        # bf16 weight
                        + 4 * OUT_PAD            # bias
                        + 4 * M_pad * OUT_PAD))  # out

    out_pad = pl.pallas_call(
        kernel,
        out_shape=jax.ShapeDtypeStruct((M_pad, OUT_PAD), jnp.float32),
        grid_spec=pltpu.PrefetchScalarGridSpec(
            num_scalar_prefetch=1,
            grid=grid,
            in_specs=[
                pl.BlockSpec((TM, F), lambda i, seed: (i, 0)),        # x tile
                pl.BlockSpec((F, OUT_PAD), lambda i, seed: (0, 0)),   # weight (resident)
                pl.BlockSpec((1, OUT_PAD), lambda i, seed: (0, 0)),   # bias (resident)
            ],
            out_specs=pl.BlockSpec((TM, OUT_PAD), lambda i, seed: (i, 0)),
        ),
        compiler_params=pltpu.CompilerParams(
            dimension_semantics=("parallel",)),   # v7x: shard row tiles over 2 TCs
        cost_estimate=cost,
    )(seed, x2, w_pad, b_pad)

    return out_pad[:M, :OUT_FEATURES].reshape(B, S, OUT_FEATURES)


if __name__ == "__main__":
    key = jax.random.PRNGKey(0)
    k_x, k_w, k_b = jax.random.split(key, 3)

    # Small shapes consistent with the module: batch=2, seq=8, hidden=1024
    # (1024 is fixed by nn.Linear(1024, output_dim)).
    B, S = 2, 8
    x = jax.random.normal(k_x, (B, S, IN_FEATURES), dtype=jnp.float32)

    # Deterministic nn.Linear-style init: U(-1/sqrt(fan_in), 1/sqrt(fan_in)).
    bound = 1.0 / (IN_FEATURES ** 0.5)
    weight = jax.random.uniform(k_w, (IN_FEATURES, OUT_FEATURES),
                                minval=-bound, maxval=bound, dtype=jnp.float32)
    bias = jax.random.uniform(k_b, (OUT_FEATURES,),
                              minval=-bound, maxval=bound, dtype=jnp.float32)

    w_pad, b_pad = pad_params(weight, bias)   # padded once, reused every call
    seed0 = jnp.asarray([0], dtype=jnp.int32)

    # Inference mode (dropout is identity) — check against a bf16-matmul ref.
    out = elmo_head(x, w_pad, b_pad, seed0, dropout_rate=0.0)
    out = jax.block_until_ready(out)
    ref = jnp.dot(x.reshape(-1, IN_FEATURES).astype(jnp.bfloat16),
                  weight.astype(jnp.bfloat16),
                  preferred_element_type=jnp.float32) + bias
    ref = ref.reshape(B, S, OUT_FEATURES)
    assert out.shape == (B, S, OUT_FEATURES)
    assert jnp.allclose(out, ref, atol=1e-2, rtol=1e-2), \
        f"max abs err {jnp.max(jnp.abs(out - ref))}"

    # Training-mode dropout path (exercises the in-kernel hash PRNG mask).
    seed1 = jnp.asarray([1234], dtype=jnp.int32)
    out_drop = elmo_head(x, w_pad, b_pad, seed1, dropout_rate=0.5)
    out_drop = jax.block_until_ready(out_drop)
    assert out_drop.shape == (B, S, OUT_FEATURES)
    assert bool(jnp.all(jnp.isfinite(out_drop)))
    # with 50% dropout the logits should differ from the no-dropout output
    assert not bool(jnp.allclose(out_drop, out, atol=1e-3))

    print("KERNEL_OK")
</pallas_src>

<mosaic_0001>
module attributes {stable_mosaic.version = 11 : i64} {
  func.func @_elmo_head_kernel(%arg0: i32, %arg1: memref<1xi32, #tpu.memory_space<smem>>, %arg2: memref<16x1024xf32, #tpu.memory_space<vmem>>, %arg3: memref<1024x128xbf16, #tpu.memory_space<vmem>>, %arg4: memref<1x128xf32, #tpu.memory_space<vmem>>, %arg5: memref<16x128xf32, #tpu.memory_space<vmem>>) attributes {dimension_semantics = [#tpu.dimension_semantics<parallel>], iteration_bounds = array<i64: 1>, scalar_prefetch = 1 : i64, scratch_operands = 0 : i64, tpu.core_type = #tpu.core_type<tc>, window_params = [{transform_indices = @transform_0, window_bounds = array<i64: 16, 1024>}, {pipeline_mode = #tpu.pipeline_mode<synchronous>, transform_indices = @transform_1, window_bounds = array<i64: 1024, 128>}, {pipeline_mode = #tpu.pipeline_mode<synchronous>, transform_indices = @transform_2, window_bounds = array<i64: 1, 128>}, {transform_indices = @transform_3, window_bounds = array<i64: 16, 128>}]} {
    %c0 = arith.constant 0 : index
    %c0_0 = arith.constant 0 : index
    %0 = vector.load %arg2[%c0, %c0_0] : memref<16x1024xf32, #tpu.memory_space<vmem>>, vector<16x1024xf32>
    %1 = arith.truncf %0 : vector<16x1024xf32> to vector<16x1024xbf16>
    %c0_1 = arith.constant 0 : index
    %c0_2 = arith.constant 0 : index
    %2 = vector.load %arg3[%c0_1, %c0_2] : memref<1024x128xbf16, #tpu.memory_space<vmem>>, vector<1024x128xbf16>
    %cst = arith.constant dense<0.000000e+00> : vector<16x128xf32>
    %3 = tpu.matmul %1, %2, %cst {dimension_numbers = #tpu.dot_dimension_numbers<[1], [0], [0], [1], [0, 0, 1, 1], [], []>} : vector<16x1024xbf16>, vector<1024x128xbf16>, vector<16x128xf32> -> vector<16x128xf32>
    %c0_3 = arith.constant 0 : index
    %c0_4 = arith.constant 0 : index
    %4 = vector.load %arg4[%c0_3, %c0_4] : memref<1x128xf32, #tpu.memory_space<vmem>>, vector<1x128xf32>
    %5 = vector.broadcast %4 : vector<1x128xf32> to vector<16x128xf32>
    %6 = arith.addf %3, %5 : vector<16x128xf32>
    %c0_5 = arith.constant 0 : index
    %c0_6 = arith.constant 0 : index
    %7 = vector.load %arg5[%c0_5, %c0_6] : memref<16x128xf32, #tpu.memory_space<vmem>>, vector<16x128xf32>
    tpu.vector_store %arg5[%c0_5, %c0_6], %6 {strides = array<i32>} : memref<16x128xf32, #tpu.memory_space<vmem>>, vector<16x128xf32>,
    return
  }
  func.func @transform_0(%arg0: i32, %arg1: memref<1xi32, #tpu.memory_space<smem>>) -> (i32, i32) {
    %c0_i32 = arith.constant 0 : i32
    %c0_i32_0 = arith.constant 0 : i32
    return %arg0, %c0_i32 : i32, i32
  }
  func.func @transform_1(%arg0: i32, %arg1: memref<1xi32, #tpu.memory_space<smem>>) -> (i32, i32) {
    %c0_i32 = arith.constant 0 : i32
    %c0_i32_0 = arith.constant 0 : i32
    %c0_i32_1 = arith.constant 0 : i32
    return %c0_i32, %c0_i32_0 : i32, i32
  }
  func.func @transform_2(%arg0: i32, %arg1: memref<1xi32, #tpu.memory_space<smem>>) -> (i32, i32) {
    %c0_i32 = arith.constant 0 : i32
    %c0_i32_0 = arith.constant 0 : i32
    %c0_i32_1 = arith.constant 0 : i32
    return %c0_i32, %c0_i32_0 : i32, i32
  }
  func.func @transform_3(%arg0: i32, %arg1: memref<1xi32, #tpu.memory_space<smem>>) -> (i32, i32) {
    %c0_i32 = arith.constant 0 : i32
    %c0_i32_0 = arith.constant 0 : i32
    return %arg0, %c0_i32 : i32, i32
  }
}

</mosaic_0001>

<llo_original>
// kernel: elmo_head.1
$region0: #{elmo_head.1}
  #allocation0 [shape = 'u32[]', space=smem, size = 0x4, offset = 0x4, fixed_abs, tag = 'smem constant byte address 0x4 - core index']
  #allocation1 [shape = 'u32[72,128]{1,0:T(1,128)}', space=vmem, size = 0x9000, scoped, tag = 'internal scratch']
  #allocation2 [shape = 's32[1]{0}', space=sflag, size = 0x4, scoped, tag = 'scoped memory for elmo_head.1']
  #allocation3 [shape = 's32[1]{0:T(128)S(6)}', space=smem, size = 0x200, scoped, tag = 'prefetched SMEM operand 0']
  %s0 = inlined_call_operand.<no memory space> [shape: s32[1], index: 0, kind: input, shape index: {}]
  %s1 = inlined_call_operand.hbm [shape: f32[16,1024], index: 1, kind: input, shape index: {}]
  %s2 = inlined_call_operand.hbm [shape: bf16[1024,128], index: 2, kind: input, shape index: {}]
  %s3 = inlined_call_operand.vmem [shape: f32[1,128], index: 3, kind: input, shape index: {}]
  %s4 = inlined_call_operand.vmem [shape: f32[16,128], index: 4, kind: output, shape index: {}]
  %s5 = sld [smem:[#allocation0]]
  $region30: #{elmo_head.1} parent=0
    _
  %s7 = ssub.s32 1, %s5
  %s8 = scalar_select 0, %s7, %s5
  %9 = sst [smem:[#allocation3]] %s0
  $region1: #{elmo_head.1} parent=0
    #allocation4 [shape = 'u8[65536]{0}', space=vmem, size = 0x10000, scoped, tag = 'input window, operand 1, single buffered']
    #allocation5 [shape = 's32[1]{0}', space=sflag, size = 0x4, scoped, tag = 'scoped memory for elmo_head.1']
    #allocation6 [shape = 'u8[262144]{0}', space=vmem, size = 0x40000, scoped, tag = 'input window, operand 2, single buffered']
    #allocation7 [shape = 's32[1]{0}', space=sflag, size = 0x4, scoped, tag = 'scoped memory for elmo_head.1']
    %10 = vsyncpa [#allocation5], 0
    %11 = vsyncpa [#allocation7], 0
    // Predicated region
    $region2: #{elmo_head.1} parent=1 // pred_check
      _
    $region3: #{elmo_head.1} parent=1 // pred_check_branch
      %13 = sbr.rel (0) target = $region5
    $region4: #{elmo_head.1} parent=1 // pred_region
      %15 = vsyncadd [#allocation5], 0
      %s16 = sshll.u32 %s1, 4
      %s17 = int_to_ptr.hbm [resolvable:$true] %s16
      %s18 = sshll.u32 [#allocation4], 4
      %s19 = int_to_ptr.vmem [resolvable:$true] %s18
      %24 = dma.hbm_to_vmem [thread:$0]  %s17, 2048, %s19, [#allocation5], 1024, 1024, 64
    $region5: #{elmo_head.1} parent=1 // pred_fallthru
      _
    // Predicated region
    $region6: #{elmo_head.1} parent=1 // pred_check
      _
    $region7: #{elmo_head.1} parent=1 // pred_check_branch
      %26 = sbr.rel (0) target = $region9
    $region8: #{elmo_head.1} parent=1 // pred_region
      %28 = vsyncadd [#allocation7], 0
      %s29 = sshll.u32 %s2, 4
      %s30 = int_to_ptr.hbm [resolvable:$true] %s29
      %s31 = sshll.u32 [#allocation6], 4
      %s32 = int_to_ptr.vmem [resolvable:$true] %s31
      %37 = dma.hbm_to_vmem [thread:$0]  %s30, 8192, %s32, [#allocation7], 64, 64, 4
    $region9: #{elmo_head.1} parent=1 // pred_fallthru
      _
    // Predicated region
    $region10: #{elmo_head.1} parent=1 // pred_check
      _
    $region11: #{elmo_head.1} parent=1 // pred_check_branch
      %39 = sbr.rel (0) target = $region13
    $region12: #{elmo_head.1} parent=1 // pred_region
      _
    $region13: #{elmo_head.1} parent=1 // pred_fallthru
      _
    // Predicated region
    $region14: #{elmo_head.1} parent=1 // pred_check
      _
    $region15: #{elmo_head.1} parent=1 // pred_check_branch
      %41 = sbr.rel (0) target = $region17
    $region16: #{elmo_head.1} parent=1 // pred_region
      %43 = dma.done [#allocation5], 2048
    $region17: #{elmo_head.1} parent=1 // pred_fallthru
      _
    // Predicated region
    $region18: #{elmo_head.1} parent=1 // pred_check
      _
    $region19: #{elmo_head.1} parent=1 // pred_check_branch
      %45 = sbr.rel (0) target = $region21
    $region20: #{elmo_head.1} parent=1 // pred_region
      %47 = dma.done [#allocation7], 8192
    $region21: #{elmo_head.1} parent=1 // pred_fallthru
      _
    %v48 = vld [vmem:[#allocation4] sm:$0xff]
    %v49 = vld [vmem:[#allocation4 + $0x8] sm:$0xff]
    %v50 = vld [vmem:[#allocation4 + $0x10] sm:$0xff]
    %v51 = vld [vmem:[#allocation4 + $0x18] sm:$0xff]
    %v52 = vld [vmem:[#allocation4 + $0x20] sm:$0xff]
    %v53 = vld [vmem:[#allocation4 + $0x28] sm:$0xff]
    %v54 = vld [vmem:[#allocation4 + $0x30] sm:$0xff]
    %v55 = vld [vmem:[#allocation4 + $0x38] sm:$0xff]
    %v56 = vld [vmem:[#allocation4 + $0x40] sm:$0xff]
    %v57 = vld [vmem:[#allocation4 + $0x48] sm:$0xff]
    %v58 = vld [vmem:[#allocation4 + $0x50] sm:$0xff]
    %v59 = vld [vmem:[#allocation4 + $0x58] sm:$0xff]
    %v60 = vld [vmem:[#allocation4 + $0x60] sm:$0xff]
    %v61 = vld [vmem:[#allocation4 + $0x68] sm:$0xff]
    %v62 = vld [vmem:[#allocation4 + $0x70] sm:$0xff]
    %v63 = vld [vmem:[#allocation4 + $0x78] sm:$0xff]
    %v64 = vpack.c.bf16 %v56, %v48
    %v65 = vpack.c.bf16 %v57, %v49
    %v66 = vpack.c.bf16 %v58, %v50
    %v67 = vpack.c.bf16 %v59, %v51
    %v68 = vpack.c.bf16 %v60, %v52
    %v69 = vpack.c.bf16 %v61, %v53
    %v70 = vpack.c.bf16 %v62, %v54
    %v71 = vpack.c.bf16 %v63, %v55
    %v72 = vld [vmem:[#allocation6] sm:$0xf]
    %v73 = vld [vmem:[#allocation6 + $0x4] sm:$0xf]
    %v74 = vld [vmem:[#allocation6 + $0x8] sm:$0xf]
    %v75 = vld [vmem:[#allocation6 + $0xc] sm:$0xf]
    %v76 = vld [vmem:[#allocation6 + $0x10] sm:$0xf]
    %v77 = vld [vmem:[#allocation6 + $0x14] sm:$0xf]
    %v78 = vld [vmem:[#allocation6 + $0x18] sm:$0xf]
    %v79 = vld [vmem:[#allocation6 + $0x1c] sm:$0xf]
    %v80 = vld [vmem:[#allocation6 + $0x20] sm:$0xf]
    %v81 = vld [vmem:[#allocation6 + $0x24] sm:$0xf]
    %v82 = vld [vmem:[#allocation6 + $0x28] sm:$0xf]
    %v83 = vld [vmem:[#allocation6 + $0x2c] sm:$0xf]
    %v84 = vld [vmem:[#allocation6 + $0x30] sm:$0xf]
    %v85 = vld [vmem:[#allocation6 + $0x34] sm:$0xf]
    %v86 = vld [vmem:[#allocation6 + $0x38] sm:$0xf]
    %v87 = vld [vmem:[#allocation6 + $0x3c] sm:$0xf]
    %v88 = vld [vmem:[#allocation6 + $0x40] sm:$0xf]
    %v89 = vld [vmem:[#allocation6 + $0x44] sm:$0xf]
    %v90 = vld [vmem:[#allocation6 + $0x48] sm:$0xf]
    %v91 = vld [vmem:[#allocation6 + $0x4c] sm:$0xf]
    %v92 = vld [vmem:[#allocation6 + $0x50] sm:$0xf]
    %v93 = vld [vmem:[#allocation6 + $0x54] sm:$0xf]
    %v94 = vld [vmem:[#allocation6 + $0x58] sm:$0xf]
    %v95 = vld [vmem:[#allocation6 + $0x5c] sm:$0xf]
    %v96 = vld [vmem:[#allocation6 + $0x60] sm:$0xf]
    %v97 = vld [vmem:[#allocation6 + $0x64] sm:$0xf]
    %v98 = vld [vmem:[#allocation6 + $0x68] sm:$0xf]
    %v99 = vld [vmem:[#allocation6 + $0x6c] sm:$0xf]
    %v100 = vld [vmem:[#allocation6 + $0x70] sm:$0xf]
    %v101 = vld [vmem:[#allocation6 + $0x74] sm:$0xf]
    %v102 = vld [vmem:[#allocation6 + $0x78] sm:$0xf]
    %v103 = vld [vmem:[#allocation6 + $0x7c] sm:$0xf]
    %v104 = vld [vmem:[#allocation6 + $0x80] sm:$0xf]
    %v105 = vld [vmem:[#allocation6 + $0x84] sm:$0xf]
    %v106 = vld [vmem:[#allocation6 + $0x88] sm:$0xf]
    %v107 = vld [vmem:[#allocation6 + $0x8c] sm:$0xf]
    %v108 = vld [vmem:[#allocation6 + $0x90] sm:$0xf]
    %v109 = vld [vmem:[#allocation6 + $0x94] sm:$0xf]
    %v110 = vld [vmem:[#allocation6 + $0x98] sm:$0xf]
    %v111 = vld [vmem:[#allocation6 + $0x9c] sm:$0xf]
    %v112 = vld [vmem:[#allocation6 + $0xa0] sm:$0xf]
    %v113 = vld [vmem:[#allocation6 + $0xa4] sm:$0xf]
    %v114 = vld [vmem:[#allocation6 + $0xa8] sm:$0xf]
    %v115 = vld [vmem:[#allocation6 + $0xac] sm:$0xf]
    %v116 = vld [vmem:[#allocation6 + $0xb0] sm:$0xf]
    %v117 = vld [vmem:[#allocation6 + $0xb4] sm:$0xf]
    %v118 = vld [vmem:[#allocation6 + $0xb8] sm:$0xf]
    %v119 = vld [vmem:[#allocation6 + $0xbc] sm:$0xf]
    %v120 = vld [vmem:[#allocation6 + $0xc0] sm:$0xf]
    %v121 = vld [vmem:[#allocation6 + $0xc4] sm:$0xf]
    %v122 = vld [vmem:[#allocation6 + $0xc8] sm:$0xf]
    %v123 = vld [vmem:[#allocation6 + $0xcc] sm:$0xf]
    %v124 = vld [vmem:[#allocation6 + $0xd0] sm:$0xf]
    %v125 = vld [vmem:[#allocation6 + $0xd4] sm:$0xf]
    %v126 = vld [vmem:[#allocation6 + $0xd8] sm:$0xf]
    %v127 = vld [vmem:[#allocation6 + $0xdc] sm:$0xf]
    %v128 = vld [vmem:[#allocation6 + $0xe0] sm:$0xf]
    %v129 = vld [vmem:[#allocation6 + $0xe4] sm:$0xf]
    %v130 = vld [vmem:[#allocation6 + $0xe8] sm:$0xf]
    %v131 = vld [vmem:[#allocation6 + $0xec] sm:$0xf]
    %v132 = vld [vmem:[#allocation6 + $0xf0] sm:$0xf]
    %v133 = vld [vmem:[#allocation6 + $0xf4] sm:$0xf]
    %v134 = vld [vmem:[#allocation6 + $0xf8] sm:$0xf]
    %v135 = vld [vmem:[#allocation6 + $0xfc] sm:$0xf]
    %v136 = vld [vmem:[#allocation6 + $0x100] sm:$0xf]
    %v137 = vld [vmem:[#allocation6 + $0x104] sm:$0xf]
    %v138 = vld [vmem:[#allocation6 + $0x108] sm:$0xf]
    %v139 = vld [vmem:[#allocation6 + $0x10c] sm:$0xf]
    %v140 = vld [vmem:[#allocation6 + $0x110] sm:$0xf]
    %v141 = vld [vmem:[#allocation6 + $0x114] sm:$0xf]
    %v142 = vld [vmem:[#allocation6 + $0x118] sm:$0xf]
    %v143 = vld [vmem:[#allocation6 + $0x11c] sm:$0xf]
    %v144 = vld [vmem:[#allocation6 + $0x120] sm:$0xf]
    %v145 = vld [vmem:[#allocation6 + $0x124] sm:$0xf]
    %v146 = vld [vmem:[#allocation6 + $0x128] sm:$0xf]
    %v147 = vld [vmem:[#allocation6 + $0x12c] sm:$0xf]
    %v148 = vld [vmem:[#allocation6 + $0x130] sm:$0xf]
    %v149 = vld [vmem:[#allocation6 + $0x134] sm:$0xf]
    %v150 = vld [vmem:[#allocation6 + $0x138] sm:$0xf]
    %v151 = vld [vmem:[#allocation6 + $0x13c] sm:$0xf]
    %v152 = vld [vmem:[#allocation6 + $0x140] sm:$0xf]
    %v153 = vld [vmem:[#allocation6 + $0x144] sm:$0xf]
    %v154 = vld [vmem:[#allocation6 + $0x148] sm:$0xf]
    %v155 = vld [vmem:[#allocation6 + $0x14c] sm:$0xf]
    %v156 = vld [vmem:[#allocation6 + $0x150] sm:$0xf]
    %v157 = vld [vmem:[#allocation6 + $0x154] sm:$0xf]
    %v158 = vld [vmem:[#allocation6 + $0x158] sm:$0xf]
    %v159 = vld [vmem:[#allocation6 + $0x15c] sm:$0xf]
    %v160 = vld [vmem:[#allocation6 + $0x160] sm:$0xf]
    %v161 = vld [vmem:[#allocation6 + $0x164] sm:$0xf]
    %v162 = vld [vmem:[#allocation6 + $0x168] sm:$0xf]
    %v163 = vld [vmem:[#allocation6 + $0x16c] sm:$0xf]
    %v164 = vld [vmem:[#allocation6 + $0x170] sm:$0xf]
    %v165 = vld [vmem:[#allocation6 + $0x174] sm:$0xf]
    %v166 = vld [vmem:[#allocation6 + $0x178] sm:$0xf]
    %v167 = vld [vmem:[#allocation6 + $0x17c] sm:$0xf]
    %v168 = vld [vmem:[#allocation6 + $0x180] sm:$0xf]
    %v169 = vld [vmem:[#allocation6 + $0x184] sm:$0xf]
    %v170 = vld [vmem:[#allocation6 + $0x188] sm:$0xf]
    %v171 = vld [vmem:[#allocation6 + $0x18c] sm:$0xf]
    %v172 = vld [vmem:[#allocation6 + $0x190] sm:$0xf]
    %v173 = vld [vmem:[#allocation6 + $0x194] sm:$0xf]
    %v174 = vld [vmem:[#allocation6 + $0x198] sm:$0xf]
    %v175 = vld [vmem:[#allocation6 + $0x19c] sm:$0xf]
    %v176 = vld [vmem:[#allocation6 + $0x1a0] sm:$0xf]
    %v177 = vld [vmem:[#allocation6 + $0x1a4] sm:$0xf]
    %v178 = vld [vmem:[#allocation6 + $0x1a8] sm:$0xf]
    %v179 = vld [vmem:[#allocation6 + $0x1ac] sm:$0xf]
    %v180 = vld [vmem:[#allocation6 + $0x1b0] sm:$0xf]
    %v181 = vld [vmem:[#allocation6 + $0x1b4] sm:$0xf]
    %v182 = vld [vmem:[#allocation6 + $0x1b8] sm:$0xf]
    %v183 = vld [vmem:[#allocation6 + $0x1bc] sm:$0xf]
    %v184 = vld [vmem:[#allocation6 + $0x1c0] sm:$0xf]
    %v185 = vld [vmem:[#allocation6 + $0x1c4] sm:$0xf]
    %v186 = vld [vmem:[#allocation6 + $0x1c8] sm:$0xf]
    %v187 = vld [vmem:[#allocation6 + $0x1cc] sm:$0xf]
    %v188 = vld [vmem:[#allocation6 + $0x1d0] sm:$0xf]
    %v189 = vld [vmem:[#allocation6 + $0x1d4] sm:$0xf]
    %v190 = vld [vmem:[#allocation6 + $0x1d8] sm:$0xf]
    %v191 = vld [vmem:[#allocation6 + $0x1dc] sm:$0xf]
    %v192 = vld [vmem:[#allocation6 + $0x1e0] sm:$0xf]
    %v193 = vld [vmem:[#allocation6 + $0x1e4] sm:$0xf]
    %v194 = vld [vmem:[#allocation6 + $0x1e8] sm:$0xf]
    %v195 = vld [vmem:[#allocation6 + $0x1ec] sm:$0xf]
    %v196 = vld [vmem:[#allocation6 + $0x1f0] sm:$0xf]
    %v197 = vld [vmem:[#allocation6 + $0x1f4] sm:$0xf]
    %v198 = vld [vmem:[#allocation6 + $0x1f8] sm:$0xf]
    %v199 = vld [vmem:[#allocation6 + $0x1fc] sm:$0xf]
    %v200 = vld [vmem:[%s3] sm:$0x1]
    %v202 = vperm.slane %v200, 0
    %v332 = vunpack.c.l.b16 %v72
    %v333 = vunpack.c.l.b16 %v73
    %v334 = vunpack.c.l.b16 %v74
    %v335 = vunpack.c.l.b16 %v75
    %v336 = vunpack.c.l.b16 %v76
    %v337 = vunpack.c.l.b16 %v77
    %v338 = vunpack.c.l.b16 %v78
    %v339 = vunpack.c.l.b16 %v79
    %v340 = vunpack.c.l.b16 %v80
    %v341 = vunpack.c.l.b16 %v81
    %v342 = vunpack.c.l.b16 %v82
    %v343 = vunpack.c.l.b16 %v83
    %v344 = vunpack.c.l.b16 %v84
    %v345 = vunpack.c.l.b16 %v85
    %v346 = vunpack.c.l.b16 %v86
    %v347 = vunpack.c.l.b16 %v87
    %v348 = vunpack.c.l.b16 %v88
    %v349 = vunpack.c.l.b16 %v89
    %v350 = vunpack.c.l.b16 %v90
    %v351 = vunpack.c.l.b16 %v91
    %v352 = vunpack.c.l.b16 %v92
    %v353 = vunpack.c.l.b16 %v93
    %v354 = vunpack.c.l.b16 %v94
    %v355 = vunpack.c.l.b16 %v95
    %v356 = vunpack.c.l.b16 %v96
    %v357 = vunpack.c.l.b16 %v97
    %v358 = vunpack.c.l.b16 %v98
    %v359 = vunpack.c.l.b16 %v99
    %v360 = vunpack.c.l.b16 %v100
    %v361 = vunpack.c.l.b16 %v101
    %v362 = vunpack.c.l.b16 %v102
    %v363 = vunpack.c.l.b16 %v103
    %v364 = vunpack.c.l.b16 %v104
    %v365 = vunpack.c.l.b16 %v105
    %v366 = vunpack.c.l.b16 %v106
    %v367 = vunpack.c.l.b16 %v107
    %v368 = vunpack.c.l.b16 %v108
    %v369 = vunpack.c.l.b16 %v109
    %v370 = vunpack.c.l.b16 %v110
    %v371 = vunpack.c.l.b16 %v111
    %v372 = vunpack.c.l.b16 %v112
    %v373 = vunpack.c.l.b16 %v113
    %v374 = vunpack.c.l.b16 %v114
    %v375 = vunpack.c.l.b16 %v115
    %v376 = vunpack.c.l.b16 %v116
    %v377 = vunpack.c.l.b16 %v117
    %v378 = vunpack.c.l.b16 %v118
    %v379 = vunpack.c.l.b16 %v119
    %v380 = vunpack.c.l.b16 %v120
    %v381 = vunpack.c.l.b16 %v121
    %v382 = vunpack.c.l.b16 %v122
    %v383 = vunpack.c.l.b16 %v123
    %v384 = vunpack.c.l.b16 %v124
    %v385 = vunpack.c.l.b16 %v125
    %v386 = vunpack.c.l.b16 %v126
    %v387 = vunpack.c.l.b16 %v127
    %v388 = vunpack.c.l.b16 %v128
    %v389 = vunpack.c.l.b16 %v129
    %v390 = vunpack.c.l.b16 %v130
    %v391 = vunpack.c.l.b16 %v131
    %v392 = vunpack.c.l.b16 %v132
    %v393 = vunpack.c.l.b16 %v133
    %v394 = vunpack.c.l.b16 %v134
    %v395 = vunpack.c.l.b16 %v135
    %v396 = vunpack.c.l.b16 %v136
    %v397 = vunpack.c.l.b16 %v137
    %v398 = vunpack.c.l.b16 %v138
    %v399 = vunpack.c.l.b16 %v139
    %v400 = vunpack.c.l.b16 %v140
    %v401 = vunpack.c.l.b16 %v141
    %v402 = vunpack.c.l.b16 %v142
    %v403 = vunpack.c.l.b16 %v143
    %v404 = vunpack.c.l.b16 %v144
    %v405 = vunpack.c.l.b16 %v145
    %v406 = vunpack.c.l.b16 %v146
    %v407 = vunpack.c.l.b16 %v147
    %v408 = vunpack.c.l.b16 %v148
    %v409 = vunpack.c.l.b16 %v149
    %v410 = vunpack.c.l.b16 %v150
    %v411 = vunpack.c.l.b16 %v151
    %v412 = vunpack.c.l.b16 %v152
    %v413 = vunpack.c.l.b16 %v153
    %v414 = vunpack.c.l.b16 %v154
    %v415 = vunpack.c.l.b16 %v155
    %v416 = vunpack.c.l.b16 %v156
    %v417 = vunpack.c.l.b16 %v157
    %v418 = vunpack.c.l.b16 %v158
    %v419 = vunpack.c.l.b16 %v159
    %v420 = vunpack.c.l.b16 %v160
    %v421 = vunpack.c.l.b16 %v161
    %v422 = vunpack.c.l.b16 %v162
    %v423 = vunpack.c.l.b16 %v163
    %v424 = vunpack.c.l.b16 %v164
    %v425 = vunpack.c.l.b16 %v165
    %v426 = vunpack.c.l.b16 %v166
    %v427 = vunpack.c.l.b16 %v167
    %v428 = vunpack.c.l.b16 %v168
    %v429 = vunpack.c.l.b16 %v169
    %v430 = vunpack.c.l.b16 %v170
    %v431 = vunpack.c.l.b16 %v171
    %v432 = vunpack.c.l.b16 %v172
    %v433 = vunpack.c.l.b16 %v173
    %v434 = vunpack.c.l.b16 %v174
    %v435 = vunpack.c.l.b16 %v175
    %v436 = vunpack.c.l.b16 %v176
    %v437 = vunpack.c.l.b16 %v177
    %v438 = vunpack.c.l.b16 %v178
    %v439 = vunpack.c.l.b16 %v179
    %v440 = vunpack.c.l.b16 %v180
    %v441 = vunpack.c.l.b16 %v181
    %v442 = vunpack.c.l.b16 %v182
    %v443 = vunpack.c.l.b16 %v183
    %v444 = vunpack.c.l.b16 %v184
    %v445 = vunpack.c.l.b16 %v185
    %v446 = vunpack.c.l.b16 %v186
    %v447 = vunpack.c.l.b16 %v187
    %v448 = vunpack.c.l.b16 %v188
    %v449 = vunpack.c.l.b16 %v189
    %v450 = vunpack.c.l.b16 %v190
    %v451 = vunpack.c.l.b16 %v191
    %v452 = vunpack.c.l.b16 %v192
    %v453 = vunpack.c.l.b16 %v193
    %v454 = vunpack.c.l.b16 %v194
    %v455 = vunpack.c.l.b16 %v195
    %v456 = vunpack.c.l.b16 %v196
    %v457 = vunpack.c.l.b16 %v197
    %v458 = vunpack.c.l.b16 %v198
    %v459 = vunpack.c.l.b16 %v199
    %v460 = vpack.c.b16 %v333, %v332
    %v461 = vpack.c.b16 %v335, %v334
    %v462 = vpack.c.b16 %v337, %v336
    %v463 = vpack.c.b16 %v339, %v338
    %v464 = vpack.c.b16 %v341, %v340
    %v465 = vpack.c.b16 %v343, %v342
    %v466 = vpack.c.b16 %v345, %v344
    %v467 = vpack.c.b16 %v347, %v346
    %v468 = vpack.c.b16 %v349, %v348
    %v469 = vpack.c.b16 %v351, %v350
    %v470 = vpack.c.b16 %v353, %v352
    %v471 = vpack.c.b16 %v355, %v354
    %v472 = vpack.c.b16 %v357, %v356
    %v473 = vpack.c.b16 %v359, %v358
    %v474 = vpack.c.b16 %v361, %v360
    %v475 = vpack.c.b16 %v363, %v362
    %v476 = vpack.c.b16 %v365, %v364
    %v477 = vpack.c.b16 %v367, %v366
    %v478 = vpack.c.b16 %v369, %v368
    %v479 = vpack.c.b16 %v371, %v370
    %v480 = vpack.c.b16 %v373, %v372
    %v481 = vpack.c.b16 %v375, %v374
    %v482 = vpack.c.b16 %v377, %v376
    %v483 = vpack.c.b16 %v379, %v378
    %v484 = vpack.c.b16 %v381, %v380
    %v485 = vpack.c.b16 %v383, %v382
    %v486 = vpack.c.b16 %v385, %v384
    %v487 = vpack.c.b16 %v387, %v386
    %v488 = vpack.c.b16 %v389, %v388
    %v489 = vpack.c.b16 %v391, %v390
    %v490 = vpack.c.b16 %v393, %v392
    %v491 = vpack.c.b16 %v395, %v394
    %v492 = vpack.c.b16 %v397, %v396
    %v493 = vpack.c.b16 %v399, %v398
    %v494 = vpack.c.b16 %v401, %v400
    %v495 = vpack.c.b16 %v403, %v402
    %v496 = vpack.c.b16 %v405, %v404
    %v497 = vpack.c.b16 %v407, %v406
    %v498 = vpack.c.b16 %v409, %v408
    %v499 = vpack.c.b16 %v411, %v410
    %v500 = vpack.c.b16 %v413, %v412
    %v501 = vpack.c.b16 %v415, %v414
    %v502 = vpack.c.b16 %v417, %v416
    %v503 = vpack.c.b16 %v419, %v418
    %v504 = vpack.c.b16 %v421, %v420
    %v505 = vpack.c.b16 %v423, %v422
    %v506 = vpack.c.b16 %v425, %v424
    %v507 = vpack.c.b16 %v427, %v426
    %v508 = vpack.c.b16 %v429, %v428
    %v509 = vpack.c.b16 %v431, %v430
    %v510 = vpack.c.b16 %v433, %v432
    %v511 = vpack.c.b16 %v435, %v434
    %v512 = vpack.c.b16 %v437, %v436
    %v513 = vpack.c.b16 %v439, %v438
    %v514 = vpack.c.b16 %v441, %v440
    %v515 = vpack.c.b16 %v443, %v442
    %v516 = vpack.c.b16 %v445, %v444
    %v517 = vpack.c.b16 %v447, %v446
    %v518 = vpack.c.b16 %v449, %v448
    %v519 = vpack.c.b16 %v451, %v450
    %v520 = vpack.c.b16 %v453, %v452
    %v521 = vpack.c.b16 %v455, %v454
    %v522 = vpack.c.b16 %v457, %v456
    %v523 = vpack.c.b16 %v459, %v458
    %588 = vmatpush.bf16.msra.mxu0 %v467
    %589 = vmatpush.bf16.msra.mxu0 %v466
    %590 = vmatpush.bf16.msra.mxu0 %v465
    %591 = vmatpush.bf16.msra.mxu0 %v464
    %592 = vmatpush.bf16.msra.mxu0 %v463
    %593 = vmatpush.bf16.msra.mxu0 %v462
    %594 = vmatpush.bf16.msra.mxu0 %v461
    %595 = vmatpush.bf16.msra.mxu0 %v460
    %596 = vmatmul.bf16.gmra.mxu0 %v64
    %v597 = vpop.f32.mrf.mxu0
    %v598 = vadd.f32 %v202, %v597
    %v599 = vpop.f32.mrf.mxu0
    %v600 = vadd.f32 %v202, %v599
    %601 = vdwg.mxu0
    %602 = vmatpush.bf16.msra.mxu0 %v475
    %603 = vmatpush.bf16.msra.mxu0 %v474
    %604 = vmatpush.bf16.msra.mxu0 %v473
    %605 = vmatpush.bf16.msra.mxu0 %v472
    %606 = vmatpush.bf16.msra.mxu0 %v471
    %607 = vmatpush.bf16.msra.mxu0 %v470
    %608 = vmatpush.bf16.msra.mxu0 %v469
    %609 = vmatpush.bf16.msra.mxu0 %v468
    %610 = vmatmul.bf16.gmra.mxu0 %v65
    %v611 = vpop.f32.mrf.mxu0
    %v612 = vadd.f32 %v598, %v611
    %v613 = vpop.f32.mrf.mxu0
    %v614 = vadd.f32 %v600, %v613
    %615 = vdwg.mxu0
    %616 = vmatpush.bf16.msra.mxu0 %v483
    %617 = vmatpush.bf16.msra.mxu0 %v482
    %618 = vmatpush.bf16.msra.mxu0 %v481
    %619 = vmatpush.bf16.msra.mxu0 %v480
    %620 = vmatpush.bf16.msra.mxu0 %v479
    %621 = vmatpush.bf16.msra.mxu0 %v478
    %622 = vmatpush.bf16.msra.mxu0 %v477
    %623 = vmatpush.bf16.msra.mxu0 %v476
    %624 = vmatmul.bf16.gmra.mxu0 %v66
    %v625 = vpop.f32.mrf.mxu0
    %v626 = vadd.f32 %v612, %v625
    %v627 = vpop.f32.mrf.mxu0
    %v628 = vadd.f32 %v614, %v627
    %629 = vdwg.mxu0
    %630 = vmatpush.bf16.msra.mxu0 %v491
    %631 = vmatpush.bf16.msra.mxu0 %v490
    %632 = vmatpush.bf16.msra.mxu0 %v489
    %633 = vmatpush.bf16.msra.mxu0 %v488
    %634 = vmatpush.bf16.msra.mxu0 %v487
    %635 = vmatpush.bf16.msra.mxu0 %v486
    %636 = vmatpush.bf16.msra.mxu0 %v485
    %637 = vmatpush.bf16.msra.mxu0 %v484
    %638 = vmatmul.bf16.gmra.mxu0 %v67
    %v639 = vpop.f32.mrf.mxu0
    %v640 = vadd.f32 %v626, %v639
    %v641 = vpop.f32.mrf.mxu0
    %v642 = vadd.f32 %v628, %v641
    %643 = vdwg.mxu0
    %644 = vmatpush.bf16.msra.mxu0 %v499
    %645 = vmatpush.bf16.msra.mxu0 %v498
    %646 = vmatpush.bf16.msra.mxu0 %v497
    %647 = vmatpush.bf16.msra.mxu0 %v496
    %648 = vmatpush.bf16.msra.mxu0 %v495
    %649 = vmatpush.bf16.msra.mxu0 %v494
    %650 = vmatpush.bf16.msra.mxu0 %v493
    %651 = vmatpush.bf16.msra.mxu0 %v492
    %652 = vmatmul.bf16.gmra.mxu0 %v68
    %v653 = vpop.f32.mrf.mxu0
    %v654 = vadd.f32 %v640, %v653
    %v655 = vpop.f32.mrf.mxu0
    %v656 = vadd.f32 %v642, %v655
    %657 = vdwg.mxu0
    %658 = vmatpush.bf16.msra.mxu0 %v507
    %659 = vmatpush.bf16.msra.mxu0 %v506
    %660 = vmatpush.bf16.msra.mxu0 %v505
    %661 = vmatpush.bf16.msra.mxu0 %v504
    %662 = vmatpush.bf16.msra.mxu0 %v503
    %663 = vmatpush.bf16.msra.mxu0 %v502
    %664 = vmatpush.bf16.msra.mxu0 %v501
    %665 = vmatpush.bf16.msra.mxu0 %v500
    %666 = vmatmul.bf16.gmra.mxu0 %v69
    %v667 = vpop.f32.mrf.mxu0
    %v668 = vadd.f32 %v654, %v667
    %v669 = vpop.f32.mrf.mxu0
    %v670 = vadd.f32 %v656, %v669
    %671 = vdwg.mxu0
    %672 = vmatpush.bf16.msra.mxu0 %v515
    %673 = vmatpush.bf16.msra.mxu0 %v514
    %674 = vmatpush.bf16.msra.mxu0 %v513
    %675 = vmatpush.bf16.msra.mxu0 %v512
    %676 = vmatpush.bf16.msra.mxu0 %v511
    %677 = vmatpush.bf16.msra.mxu0 %v510
    %678 = vmatpush.bf16.msra.mxu0 %v509
    %679 = vmatpush.bf16.msra.mxu0 %v508
    %680 = vmatmul.bf16.gmra.mxu0 %v70
    %v681 = vpop.f32.mrf.mxu0
    %v682 = vadd.f32 %v668, %v681
    %v683 = vpop.f32.mrf.mxu0
    %v684 = vadd.f32 %v670, %v683
    %685 = vdwg.mxu0
    %686 = vmatpush.bf16.msra.mxu0 %v523
    %687 = vmatpush.bf16.msra.mxu0 %v522
    %688 = vmatpush.bf16.msra.mxu0 %v521
    %689 = vmatpush.bf16.msra.mxu0 %v520
    %690 = vmatpush.bf16.msra.mxu0 %v519
    %691 = vmatpush.bf16.msra.mxu0 %v518
    %692 = vmatpush.bf16.msra.mxu0 %v517
    %693 = vmatpush.bf16.msra.mxu0 %v516
    %694 = vmatmul.bf16.gmra.mxu0 %v71
    %v695 = vpop.f32.mrf.mxu0
    %v696 = vadd.f32 %v682, %v695
    %v697 = vpop.f32.mrf.mxu0
    %v698 = vadd.f32 %v684, %v697
    %699 = vdwg.mxu0
    %700 = vst [vmem:[%s4] sm:$0xff] %v696
    %701 = vst [vmem:[%s4 + $0x8] sm:$0xff] %v698
    // Predicated region
    $region22: #{elmo_head.1} parent=1 // pred_check
      _
    $region23: #{elmo_head.1} parent=1 // pred_check_branch
      %703 = sbr.rel (0) target = $region25
    $region24: #{elmo_head.1} parent=1 // pred_region
      _
    $region25: #{elmo_head.1} parent=1 // pred_fallthru
      _
    // Predicated region
    $region26: #{elmo_head.1} parent=1 // pred_check
      _
    $region27: #{elmo_head.1} parent=1 // pred_check_branch
      %705 = sbr.rel (0) target = $region29
    $region28: #{elmo_head.1} parent=1 // pred_region
      _
    $region29: #{elmo_head.1} parent=1 // pred_fallthru
      _
    %706 = vsyncpa [#allocation5], 1
    %707 = vsyncpa [#allocation7], 1

</llo_original>
